<compile_context>
chip_gen: v6e
topology: v6e:2x2x1
jax: 0.10.0
libtpu: 0.0.40
codegen_flags: <defaults>
</compile_context>

<pallas_src>
import jax
import jax.numpy as jnp
from jax.experimental import pallas as pl
from jax.experimental.pallas import tpu as pltpu

INPUT_SIZE = 1
N_HIDDEN = 256
OUTPUT_SIZE = 1
LANE = 128           # TPU lane width
MAX_TILE = 8192      # batch-lanes per grid step (hidden scratch = 8 MiB f32)


def mlp_kernel(x_ref, w1b1_ref, w2_ref, b2_ref, o_ref):
    # x_ref   : (1, TN)   batch, lane-dense
    # w1b1_ref: (H, 2)    column 0 = w1, column 1 = b1 (PyTorch (H, in=1) layout)
    # w2_ref  : (8, H)    row 0 = w2 (lane-dense), rows 1..7 zero padding
    # b2_ref  : (1, 1)    scalar in SMEM
    x = x_ref[...]                                        # (1, TN)
    w1 = w1b1_ref[:, 0:1]                                 # (H, 1)
    b1 = w1b1_ref[:, 1:2]                                 # (H, 1)
    # Layer 1: broadcast outer product + bias + ReLU on the VPU (K=1, no MXU).
    h = jnp.maximum(w1 * x + b1, 0.0)                     # (H, TN)
    # Layer 2: 256-deep reduction on the MXU (full f32 precision).
    res = jnp.dot(w2_ref[...], h,
                  preferred_element_type=jnp.float32,
                  precision=jax.lax.Precision.HIGHEST)    # (8, TN)
    o_ref[...] = (res[0:1, :] + b2_ref[0, 0]).astype(o_ref.dtype)


def nonlinear_regression_forward(x, w1, b1, w2, b2, *, max_tile=MAX_TILE):
    """Forward pass matching PyTorch NonLinearRegression.

    x : (N, 1) float32
    w1: (H, 1), b1: (H,), w2: (1, H), b2: (1,)   -- native PyTorch layouts.
    Returns (N, 1) float32.
    """
    n = x.shape[0]
    h = w1.shape[0]

    # Lane-dense batch layout; weights packed into small resident blocks.
    x_row = x.reshape(1, n).astype(jnp.float32)                        # (1, N)
    w1b1 = jnp.concatenate(
        [w1.reshape(h, 1), b1.reshape(h, 1)], axis=1).astype(jnp.float32)  # (H, 2)
    w2_row = jnp.zeros((8, h), jnp.float32).at[0, :].set(
        w2.reshape(h).astype(jnp.float32))                             # (8, H)
    b2_s = b2.reshape(1, 1).astype(jnp.float32)                        # (1, 1) SMEM

    # Tile selection: big tiles (amortize ~0.35us/step), but keep >= 2 steps
    # when the batch spans >= 2 lane-tiles so both v7x TensorCores get work.
    n_lane = ((max(n, 1) + LANE - 1) // LANE) * LANE
    if n_lane >= 2 * LANE:
        half = ((n_lane // 2 + LANE - 1) // LANE) * LANE
        tile = min(max_tile, half)
    else:
        tile = n_lane
    n_pad = ((n_lane + tile - 1) // tile) * tile
    if n_pad != n:
        x_row = jnp.pad(x_row, ((0, 0), (0, n_pad - n)))

    grid = (n_pad // tile,)
    out_row = pl.pallas_call(
        mlp_kernel,
        out_shape=jax.ShapeDtypeStruct((1, n_pad), jnp.float32),
        grid=grid,
        in_specs=[
            pl.BlockSpec((1, tile), lambda i: (0, i)),          # x tile (lane-dense)
            pl.BlockSpec((h, 2), lambda i: (0, 0)),             # [w1|b1] resident
            pl.BlockSpec((8, h), lambda i: (0, 0)),             # w2 row resident
            pl.BlockSpec(memory_space=pltpu.MemorySpace.SMEM),  # b2 scalar
        ],
        out_specs=pl.BlockSpec((1, tile), lambda i: (0, i)),
        compiler_params=pltpu.CompilerParams(
            dimension_semantics=("parallel",),     # 2-TC sharding on v7x
            vmem_limit_bytes=48 * 1024 * 1024),    # headroom for (H, tile) hidden
        cost_estimate=pl.CostEstimate(
            flops=5 * h * n_pad,                   # mul+add+max (VPU) + 2*MXU
            transcendentals=0,
            bytes_accessed=4 * (2 * n_pad + h * LANE + 8 * h + 1)),
    )(x_row, w1b1, w2_row, b2_s)

    return out_row[:, :n].reshape(n, OUTPUT_SIZE)


def init_params(key):
    """PyTorch-layout params with nn.Linear-style U(-1/sqrt(fan_in), 1/sqrt(fan_in))."""
    k1, k2, k3, k4 = jax.random.split(key, 4)
    bound1 = 1.0 / jnp.sqrt(jnp.float32(INPUT_SIZE))
    bound2 = 1.0 / jnp.sqrt(jnp.float32(N_HIDDEN))
    w1 = jax.random.uniform(k1, (N_HIDDEN, INPUT_SIZE), jnp.float32, -bound1, bound1)
    b1 = jax.random.uniform(k2, (N_HIDDEN,), jnp.float32, -bound1, bound1)
    w2 = jax.random.uniform(k3, (OUTPUT_SIZE, N_HIDDEN), jnp.float32, -bound2, bound2)
    b2 = jax.random.uniform(k4, (OUTPUT_SIZE,), jnp.float32, -bound2, bound2)
    return w1, b1, w2, b2


def reference_forward(x, w1, b1, w2, b2):
    """Plain-JAX equivalent of the PyTorch forward (same math, PyTorch layouts)."""
    hidden = jnp.maximum(
        jnp.dot(x, w1.T, precision=jax.lax.Precision.HIGHEST) + b1, 0.0)
    return jnp.dot(hidden, w2.T, precision=jax.lax.Precision.HIGHEST) + b2


if __name__ == "__main__":
    key = jax.random.PRNGKey(0)
    k_params, k_x1, k_x2 = jax.random.split(key, 3)
    w1, b1, w2, b2 = init_params(k_params)

    # Small primary case (batch=8, pads to one 128-lane tile) and a larger case
    # exercising the multi-step grid (2 tiles) with a ragged tail.
    for kx, batch in ((k_x1, 8), (k_x2, 2053)):
        x = jax.random.uniform(kx, (batch, INPUT_SIZE), jnp.float32, -3.0, 3.0)
        out = jax.block_until_ready(
            nonlinear_regression_forward(x, w1, b1, w2, b2))
        ref = reference_forward(x, w1, b1, w2, b2)
        assert out.shape == (batch, OUTPUT_SIZE)
        assert jnp.allclose(out, ref, atol=5e-4, rtol=1e-4), (
            f"mismatch at batch={batch}: max err "
            f"{jnp.max(jnp.abs(out - ref))}")

    print("KERNEL_OK")
</pallas_src>

<mosaic_0001>
module attributes {stable_mosaic.version = 11 : i64} {
  func.func @mlp_kernel(%arg0: i32, %arg1: memref<1x128xf32, #tpu.memory_space<vmem>>, %arg2: memref<256x2xf32, #tpu.memory_space<vmem>>, %arg3: memref<8x256xf32, #tpu.memory_space<vmem>>, %arg4: memref<1x1xf32, #tpu.memory_space<smem>>, %arg5: memref<1x128xf32, #tpu.memory_space<vmem>>) attributes {dimension_semantics = [#tpu.dimension_semantics<parallel>], iteration_bounds = array<i64: 1>, scalar_prefetch = 0 : i64, scratch_operands = 0 : i64, tpu.core_type = #tpu.core_type<tc>, window_params = [{transform_indices = @transform_0, window_bounds = array<i64: 1, 128>}, {pipeline_mode = #tpu.pipeline_mode<synchronous>, transform_indices = @transform_1, window_bounds = array<i64: 256, 2>}, {pipeline_mode = #tpu.pipeline_mode<synchronous>, transform_indices = @transform_2, window_bounds = array<i64: 8, 256>}, {transform_indices = @transform_3, window_bounds = array<i64: 1, 1>}, {transform_indices = @transform_4, window_bounds = array<i64: 1, 128>}]} {
    %c0 = arith.constant 0 : index
    %c0_0 = arith.constant 0 : index
    %0 = vector.load %arg1[%c0, %c0_0] : memref<1x128xf32, #tpu.memory_space<vmem>>, vector<1x128xf32>
    %c0_1 = arith.constant 0 : index
    %c0_2 = arith.constant 0 : index
    %1 = vector.load %arg2[%c0_1, %c0_2] : memref<256x2xf32, #tpu.memory_space<vmem>>, vector<256x1xf32>
    %c0_3 = arith.constant 0 : index
    %c1 = arith.constant 1 : index
    %2 = vector.load %arg2[%c0_3, %c1] : memref<256x2xf32, #tpu.memory_space<vmem>>, vector<256x1xf32>
    %3 = vector.broadcast %1 : vector<256x1xf32> to vector<256x128xf32>
    %4 = vector.broadcast %0 : vector<1x128xf32> to vector<256x128xf32>
    %5 = arith.mulf %3, %4 : vector<256x128xf32>
    %6 = vector.broadcast %2 : vector<256x1xf32> to vector<256x128xf32>
    %7 = arith.addf %5, %6 : vector<256x128xf32>
    %cst = arith.constant 0.000000e+00 : f32
    %8 = vector.broadcast %cst : f32 to vector<256x128xf32>
    %9 = arith.maximumf %7, %8 : vector<256x128xf32>
    %c0_4 = arith.constant 0 : index
    %c0_5 = arith.constant 0 : index
    %10 = vector.load %arg3[%c0_4, %c0_5] : memref<8x256xf32, #tpu.memory_space<vmem>>, vector<8x256xf32>
    %cst_6 = arith.constant dense<0.000000e+00> : vector<8x128xf32>
    %11 = tpu.matmul %10, %9, %cst_6 {dimension_numbers = #tpu.dot_dimension_numbers<[1], [0], [0], [1], [0, 0, 1, 1], [], []>, precision = #tpu.contract_precision<fp32>} : vector<8x256xf32>, vector<256x128xf32>, vector<8x128xf32> -> vector<8x128xf32>
    %12 = vector.extract_strided_slice %11 {offsets = [0, 0], sizes = [1, 128], strides = [1, 1]} : vector<8x128xf32> to vector<1x128xf32>
    %c0_7 = arith.constant 0 : index
    %c0_8 = arith.constant 0 : index
    %13 = memref.load %arg4[%c0_7, %c0_8] : memref<1x1xf32, #tpu.memory_space<smem>>
    %14 = vector.broadcast %13 : f32 to vector<1x128xf32>
    %15 = arith.addf %12, %14 : vector<1x128xf32>
    %c0_9 = arith.constant 0 : index
    %c0_10 = arith.constant 0 : index
    %16 = vector.load %arg5[%c0_9, %c0_10] : memref<1x128xf32, #tpu.memory_space<vmem>>, vector<1x128xf32>
    tpu.vector_store %arg5[%c0_9, %c0_10], %15 {strides = array<i32>} : memref<1x128xf32, #tpu.memory_space<vmem>>, vector<1x128xf32>,
    return
  }
  func.func @transform_0(%arg0: i32) -> (i32, i32) {
    %c0_i32 = arith.constant 0 : i32
    %c0_i32_0 = arith.constant 0 : i32
    return %c0_i32, %arg0 : i32, i32
  }
  func.func @transform_1(%arg0: i32) -> (i32, i32) {
    %c0_i32 = arith.constant 0 : i32
    %c0_i32_0 = arith.constant 0 : i32
    %c0_i32_1 = arith.constant 0 : i32
    return %c0_i32, %c0_i32_0 : i32, i32
  }
  func.func @transform_2(%arg0: i32) -> (i32, i32) {
    %c0_i32 = arith.constant 0 : i32
    %c0_i32_0 = arith.constant 0 : i32
    %c0_i32_1 = arith.constant 0 : i32
    return %c0_i32, %c0_i32_0 : i32, i32
  }
  func.func @transform_3(%arg0: i32) -> (i32, i32) {
    %c0_i32 = arith.constant 0 : i32
    %c0_i32_0 = arith.constant 0 : i32
    %c0_i32_1 = arith.constant 0 : i32
    return %c0_i32, %c0_i32_0 : i32, i32
  }
  func.func @transform_4(%arg0: i32) -> (i32, i32) {
    %c0_i32 = arith.constant 0 : i32
    %c0_i32_0 = arith.constant 0 : i32
    return %c0_i32, %arg0 : i32, i32
  }
}

</mosaic_0001>

<llo_original>
// kernel: tpu_custom_call.1
$region0: #{tpu_custom_call.1}
  #allocation0 [shape = 'u32[]', space=smem, size = 0x4, offset = 0x4, fixed_abs, tag = 'smem constant byte address 0x4 - core index']
  #allocation1 [shape = 'u32[144,128]{1,0:T(1,128)}', space=vmem, size = 0x12000, scoped, tag = 'internal scratch']
  #allocation2 [shape = 'f32[1,1]{1,0:T(1,128)S(6)}', space=smem, size = 0x200, scoped, tag = 'scoped memory for tpu_custom_call.1']
  %s0 = inlined_call_operand.vmem [shape: f32[1,128], index: 0, kind: input, shape index: {}]
  %s1 = inlined_call_operand.vmem [shape: f32[256,2], index: 1, kind: input, shape index: {}]
  %s2 = inlined_call_operand.vmem [shape: f32[8,256], index: 2, kind: input, shape index: {}]
  %s3 = inlined_call_operand.<no memory space> [shape: f32[1,1], index: 3, kind: input, shape index: {}]
  %s4 = inlined_call_operand.hbm [shape: f32[1,128], index: 4, kind: output, shape index: {}]
  %s5 = sld [smem:[#allocation0]]
  $region26: #{tpu_custom_call.1} parent=0
    _
  %s7 = ssub.s32 1, %s5
  %s8 = scalar_select 0, %s7, %s5
  %9 = sst [smem:[#allocation2]] %s3
  $region1: #{tpu_custom_call.1} parent=0
    #allocation3 [shape = 'u8[512]{0}', space=vmem, size = 0x400, scoped, tag = 'output window, operand 0, single buffered']
    #allocation4 [shape = 's32[1]{0}', space=sflag, size = 0x4, scoped, tag = 'scoped memory for tpu_custom_call.1']
    %10 = vsyncpa [#allocation4], 0
    // Predicated region
    $region2: #{tpu_custom_call.1} parent=1 // pred_check
      _
    $region3: #{tpu_custom_call.1} parent=1 // pred_check_branch
      %12 = sbr.rel (0) target = $region5
    $region4: #{tpu_custom_call.1} parent=1 // pred_region
      _
    $region5: #{tpu_custom_call.1} parent=1 // pred_fallthru
      _
    // Predicated region
    $region6: #{tpu_custom_call.1} parent=1 // pred_check
      _
    $region7: #{tpu_custom_call.1} parent=1 // pred_check_branch
      %14 = sbr.rel (0) target = $region9
    $region8: #{tpu_custom_call.1} parent=1 // pred_region
      _
    $region9: #{tpu_custom_call.1} parent=1 // pred_fallthru
      _
    // Predicated region
    $region10: #{tpu_custom_call.1} parent=1 // pred_check
      _
    $region11: #{tpu_custom_call.1} parent=1 // pred_check_branch
      %16 = sbr.rel (0) target = $region13
    $region12: #{tpu_custom_call.1} parent=1 // pred_region
      _
    $region13: #{tpu_custom_call.1} parent=1 // pred_fallthru
      _
    // Predicated region
    $region14: #{tpu_custom_call.1} parent=1 // pred_check
      _
    $region15: #{tpu_custom_call.1} parent=1 // pred_check_branch
      %18 = sbr.rel (0) target = $region17
    $region16: #{tpu_custom_call.1} parent=1 // pred_region
      _
    $region17: #{tpu_custom_call.1} parent=1 // pred_fallthru
      _
    %v19 = vld [vmem:[%s0] sm:$0x1]
    %v20 = vld [vmem:[%s1] sm:$0xff]
    %v21 = vld [vmem:[%s1 + $0x8] sm:$0xff]
    %v22 = vld [vmem:[%s1 + $0x10] sm:$0xff]
    %v23 = vld [vmem:[%s1 + $0x18] sm:$0xff]
    %v24 = vld [vmem:[%s1 + $0x20] sm:$0xff]
    %v25 = vld [vmem:[%s1 + $0x28] sm:$0xff]
    %v26 = vld [vmem:[%s1 + $0x30] sm:$0xff]
    %v27 = vld [vmem:[%s1 + $0x38] sm:$0xff]
    %v28 = vld [vmem:[%s1 + $0x40] sm:$0xff]
    %v29 = vld [vmem:[%s1 + $0x48] sm:$0xff]
    %v30 = vld [vmem:[%s1 + $0x50] sm:$0xff]
    %v31 = vld [vmem:[%s1 + $0x58] sm:$0xff]
    %v32 = vld [vmem:[%s1 + $0x60] sm:$0xff]
    %v33 = vld [vmem:[%s1 + $0x68] sm:$0xff]
    %v34 = vld [vmem:[%s1 + $0x70] sm:$0xff]
    %v35 = vld [vmem:[%s1 + $0x78] sm:$0xff]
    %v36 = vld [vmem:[%s1 + $0x80] sm:$0xff]
    %v37 = vld [vmem:[%s1 + $0x88] sm:$0xff]
    %v38 = vld [vmem:[%s1 + $0x90] sm:$0xff]
    %v39 = vld [vmem:[%s1 + $0x98] sm:$0xff]
    %v40 = vld [vmem:[%s1 + $0xa0] sm:$0xff]
    %v41 = vld [vmem:[%s1 + $0xa8] sm:$0xff]
    %v42 = vld [vmem:[%s1 + $0xb0] sm:$0xff]
    %v43 = vld [vmem:[%s1 + $0xb8] sm:$0xff]
    %v44 = vld [vmem:[%s1 + $0xc0] sm:$0xff]
    %v45 = vld [vmem:[%s1 + $0xc8] sm:$0xff]
    %v46 = vld [vmem:[%s1 + $0xd0] sm:$0xff]
    %v47 = vld [vmem:[%s1 + $0xd8] sm:$0xff]
    %v48 = vld [vmem:[%s1 + $0xe0] sm:$0xff]
    %v49 = vld [vmem:[%s1 + $0xe8] sm:$0xff]
    %v50 = vld [vmem:[%s1 + $0xf0] sm:$0xff]
    %v51 = vld [vmem:[%s1 + $0xf8] sm:$0xff]
    %53 = vset.pattern.permute.xlu0 0
    %54 = vperm.xlu0 %53, %v20
    %v55 = vpop.permute.xlu0 %54
    %58 = vset.pattern.permute.xlu0 0
    %59 = vperm.xlu0 %58, %v21
    %v60 = vpop.permute.xlu0 %59
    %63 = vset.pattern.permute.xlu0 0
    %64 = vperm.xlu0 %63, %v22
    %v65 = vpop.permute.xlu0 %64
    %68 = vset.pattern.permute.xlu0 0
    %69 = vperm.xlu0 %68, %v23
    %v70 = vpop.permute.xlu0 %69
    %73 = vset.pattern.permute.xlu0 0
    %74 = vperm.xlu0 %73, %v24
    %v75 = vpop.permute.xlu0 %74
    %78 = vset.pattern.permute.xlu0 0
    %79 = vperm.xlu0 %78, %v25
    %v80 = vpop.permute.xlu0 %79
    %83 = vset.pattern.permute.xlu0 0
    %84 = vperm.xlu0 %83, %v26
    %v85 = vpop.permute.xlu0 %84
    %88 = vset.pattern.permute.xlu0 0
    %89 = vperm.xlu0 %88, %v27
    %v90 = vpop.permute.xlu0 %89
    %93 = vset.pattern.permute.xlu0 0
    %94 = vperm.xlu0 %93, %v28
    %v95 = vpop.permute.xlu0 %94
    %98 = vset.pattern.permute.xlu0 0
    %99 = vperm.xlu0 %98, %v29
    %v100 = vpop.permute.xlu0 %99
    %103 = vset.pattern.permute.xlu0 0
    %104 = vperm.xlu0 %103, %v30
    %v105 = vpop.permute.xlu0 %104
    %108 = vset.pattern.permute.xlu0 0
    %109 = vperm.xlu0 %108, %v31
    %v110 = vpop.permute.xlu0 %109
    %113 = vset.pattern.permute.xlu0 0
    %114 = vperm.xlu0 %113, %v32
    %v115 = vpop.permute.xlu0 %114
    %118 = vset.pattern.permute.xlu0 0
    %119 = vperm.xlu0 %118, %v33
    %v120 = vpop.permute.xlu0 %119
    %123 = vset.pattern.permute.xlu0 0
    %124 = vperm.xlu0 %123, %v34
    %v125 = vpop.permute.xlu0 %124
    %128 = vset.pattern.permute.xlu0 0
    %129 = vperm.xlu0 %128, %v35
    %v130 = vpop.permute.xlu0 %129
    %133 = vset.pattern.permute.xlu0 0
    %134 = vperm.xlu0 %133, %v36
    %v135 = vpop.permute.xlu0 %134
    %138 = vset.pattern.permute.xlu0 0
    %139 = vperm.xlu0 %138, %v37
    %v140 = vpop.permute.xlu0 %139
    %143 = vset.pattern.permute.xlu0 0
    %144 = vperm.xlu0 %143, %v38
    %v145 = vpop.permute.xlu0 %144
    %148 = vset.pattern.permute.xlu0 0
    %149 = vperm.xlu0 %148, %v39
    %v150 = vpop.permute.xlu0 %149
    %153 = vset.pattern.permute.xlu0 0
    %154 = vperm.xlu0 %153, %v40
    %v155 = vpop.permute.xlu0 %154
    %158 = vset.pattern.permute.xlu0 0
    %159 = vperm.xlu0 %158, %v41
    %v160 = vpop.permute.xlu0 %159
    %163 = vset.pattern.permute.xlu0 0
    %164 = vperm.xlu0 %163, %v42
    %v165 = vpop.permute.xlu0 %164
    %168 = vset.pattern.permute.xlu0 0
    %169 = vperm.xlu0 %168, %v43
    %v170 = vpop.permute.xlu0 %169
    %173 = vset.pattern.permute.xlu0 0
    %174 = vperm.xlu0 %173, %v44
    %v175 = vpop.permute.xlu0 %174
    %178 = vset.pattern.permute.xlu0 0
    %179 = vperm.xlu0 %178, %v45
    %v180 = vpop.permute.xlu0 %179
    %183 = vset.pattern.permute.xlu0 0
    %184 = vperm.xlu0 %183, %v46
    %v185 = vpop.permute.xlu0 %184
    %188 = vset.pattern.permute.xlu0 0
    %189 = vperm.xlu0 %188, %v47
    %v190 = vpop.permute.xlu0 %189
    %193 = vset.pattern.permute.xlu0 0
    %194 = vperm.xlu0 %193, %v48
    %v195 = vpop.permute.xlu0 %194
    %198 = vset.pattern.permute.xlu0 0
    %199 = vperm.xlu0 %198, %v49
    %v200 = vpop.permute.xlu0 %199
    %203 = vset.pattern.permute.xlu0 0
    %204 = vperm.xlu0 %203, %v50
    %v205 = vpop.permute.xlu0 %204
    %208 = vset.pattern.permute.xlu0 0
    %209 = vperm.xlu0 %208, %v51
    %v210 = vpop.permute.xlu0 %209
    %v213 = vlaneseq
    %v214 = vshrl.u32 %v213, 7
    %v215 = vsub.s32 0, %v214
    %v216 = vrot.slane %v19, %v215
    %v218 = vmul.f32 %v55, %v216
    %v219 = vmul.f32 %v60, %v216
    %v220 = vmul.f32 %v65, %v216
    %v221 = vmul.f32 %v70, %v216
    %v222 = vmul.f32 %v75, %v216
    %v223 = vmul.f32 %v80, %v216
    %v224 = vmul.f32 %v85, %v216
    %v225 = vmul.f32 %v90, %v216
    %v226 = vmul.f32 %v95, %v216
    %v227 = vmul.f32 %v100, %v216
    %v228 = vmul.f32 %v105, %v216
    %v229 = vmul.f32 %v110, %v216
    %v230 = vmul.f32 %v115, %v216
    %v231 = vmul.f32 %v120, %v216
    %v232 = vmul.f32 %v125, %v216
    %v233 = vmul.f32 %v130, %v216
    %v234 = vmul.f32 %v135, %v216
    %v235 = vmul.f32 %v140, %v216
    %v236 = vmul.f32 %v145, %v216
    %v237 = vmul.f32 %v150, %v216
    %v238 = vmul.f32 %v155, %v216
    %v239 = vmul.f32 %v160, %v216
    %v240 = vmul.f32 %v165, %v216
    %v241 = vmul.f32 %v170, %v216
    %v242 = vmul.f32 %v175, %v216
    %v243 = vmul.f32 %v180, %v216
    %v244 = vmul.f32 %v185, %v216
    %v245 = vmul.f32 %v190, %v216
    %v246 = vmul.f32 %v195, %v216
    %v247 = vmul.f32 %v200, %v216
    %v248 = vmul.f32 %v205, %v216
    %v249 = vmul.f32 %v210, %v216
    %250 = vset.pattern.permute.xlu0 1
    %251 = vperm.xlu0 %250, %v20
    %v252 = vpop.permute.xlu0 %251
    %254 = vset.pattern.permute.xlu0 1
    %255 = vperm.xlu0 %254, %v21
    %v256 = vpop.permute.xlu0 %255
    %258 = vset.pattern.permute.xlu0 1
    %259 = vperm.xlu0 %258, %v22
    %v260 = vpop.permute.xlu0 %259
    %262 = vset.pattern.permute.xlu0 1
    %263 = vperm.xlu0 %262, %v23
    %v264 = vpop.permute.xlu0 %263
    %266 = vset.pattern.permute.xlu0 1
    %267 = vperm.xlu0 %266, %v24
    %v268 = vpop.permute.xlu0 %267
    %270 = vset.pattern.permute.xlu0 1
    %271 = vperm.xlu0 %270, %v25
    %v272 = vpop.permute.xlu0 %271
    %274 = vset.pattern.permute.xlu0 1
    %275 = vperm.xlu0 %274, %v26
    %v276 = vpop.permute.xlu0 %275
    %278 = vset.pattern.permute.xlu0 1
    %279 = vperm.xlu0 %278, %v27
    %v280 = vpop.permute.xlu0 %279
    %282 = vset.pattern.permute.xlu0 1
    %283 = vperm.xlu0 %282, %v28
    %v284 = vpop.permute.xlu0 %283
    %286 = vset.pattern.permute.xlu0 1
    %287 = vperm.xlu0 %286, %v29
    %v288 = vpop.permute.xlu0 %287
    %290 = vset.pattern.permute.xlu0 1
    %291 = vperm.xlu0 %290, %v30
    %v292 = vpop.permute.xlu0 %291
    %294 = vset.pattern.permute.xlu0 1
    %295 = vperm.xlu0 %294, %v31
    %v296 = vpop.permute.xlu0 %295
    %298 = vset.pattern.permute.xlu0 1
    %299 = vperm.xlu0 %298, %v32
    %v300 = vpop.permute.xlu0 %299
    %302 = vset.pattern.permute.xlu0 1
    %303 = vperm.xlu0 %302, %v33
    %v304 = vpop.permute.xlu0 %303
    %306 = vset.pattern.permute.xlu0 1
    %307 = vperm.xlu0 %306, %v34
    %v308 = vpop.permute.xlu0 %307
    %310 = vset.pattern.permute.xlu0 1
    %311 = vperm.xlu0 %310, %v35
    %v312 = vpop.permute.xlu0 %311
    %314 = vset.pattern.permute.xlu0 1
    %315 = vperm.xlu0 %314, %v36
    %v316 = vpop.permute.xlu0 %315
    %318 = vset.pattern.permute.xlu0 1
    %319 = vperm.xlu0 %318, %v37
    %v320 = vpop.permute.xlu0 %319
    %322 = vset.pattern.permute.xlu0 1
    %323 = vperm.xlu0 %322, %v38
    %v324 = vpop.permute.xlu0 %323
    %326 = vset.pattern.permute.xlu0 1
    %327 = vperm.xlu0 %326, %v39
    %v328 = vpop.permute.xlu0 %327
    %330 = vset.pattern.permute.xlu0 1
    %331 = vperm.xlu0 %330, %v40
    %v332 = vpop.permute.xlu0 %331
    %334 = vset.pattern.permute.xlu0 1
    %335 = vperm.xlu0 %334, %v41
    %v336 = vpop.permute.xlu0 %335
    %338 = vset.pattern.permute.xlu0 1
    %339 = vperm.xlu0 %338, %v42
    %v340 = vpop.permute.xlu0 %339
    %342 = vset.pattern.permute.xlu0 1
    %343 = vperm.xlu0 %342, %v43
    %v344 = vpop.permute.xlu0 %343
    %346 = vset.pattern.permute.xlu0 1
    %347 = vperm.xlu0 %346, %v44
    %v348 = vpop.permute.xlu0 %347
    %350 = vset.pattern.permute.xlu0 1
    %351 = vperm.xlu0 %350, %v45
    %v352 = vpop.permute.xlu0 %351
    %354 = vset.pattern.permute.xlu0 1
    %355 = vperm.xlu0 %354, %v46
    %v356 = vpop.permute.xlu0 %355
    %358 = vset.pattern.permute.xlu0 1
    %359 = vperm.xlu0 %358, %v47
    %v360 = vpop.permute.xlu0 %359
    %362 = vset.pattern.permute.xlu0 1
    %363 = vperm.xlu0 %362, %v48
    %v364 = vpop.permute.xlu0 %363
    %366 = vset.pattern.permute.xlu0 1
    %367 = vperm.xlu0 %366, %v49
    %v368 = vpop.permute.xlu0 %367
    %370 = vset.pattern.permute.xlu0 1
    %371 = vperm.xlu0 %370, %v50
    %v372 = vpop.permute.xlu0 %371
    %374 = vset.pattern.permute.xlu0 1
    %375 = vperm.xlu0 %374, %v51
    %v376 = vpop.permute.xlu0 %375
    %v378 = vadd.f32 %v218, %v252
    %v379 = vadd.f32 %v219, %v256
    %v380 = vadd.f32 %v220, %v260
    %v381 = vadd.f32 %v221, %v264
    %v382 = vadd.f32 %v222, %v268
    %v383 = vadd.f32 %v223, %v272
    %v384 = vadd.f32 %v224, %v276
    %v385 = vadd.f32 %v225, %v280
    %v386 = vadd.f32 %v226, %v284
    %v387 = vadd.f32 %v227, %v288
    %v388 = vadd.f32 %v228, %v292
    %v389 = vadd.f32 %v229, %v296
    %v390 = vadd.f32 %v230, %v300
    %v391 = vadd.f32 %v231, %v304
    %v392 = vadd.f32 %v232, %v308
    %v393 = vadd.f32 %v233, %v312
    %v394 = vadd.f32 %v234, %v316
    %v395 = vadd.f32 %v235, %v320
    %v396 = vadd.f32 %v236, %v324
    %v397 = vadd.f32 %v237, %v328
    %v398 = vadd.f32 %v238, %v332
    %v399 = vadd.f32 %v239, %v336
    %v400 = vadd.f32 %v240, %v340
    %v401 = vadd.f32 %v241, %v344
    %v402 = vadd.f32 %v242, %v348
    %v403 = vadd.f32 %v243, %v352
    %v404 = vadd.f32 %v244, %v356
    %v405 = vadd.f32 %v245, %v360
    %v406 = vadd.f32 %v246, %v364
    %v407 = vadd.f32 %v247, %v368
    %v408 = vadd.f32 %v248, %v372
    %v409 = vadd.f32 %v249, %v376
    %v410 = vmax.f32 %v378, 0.0
    %v411 = vmax.f32 %v379, 0.0
    %v412 = vmax.f32 %v380, 0.0
    %v413 = vmax.f32 %v381, 0.0
    %v414 = vmax.f32 %v382, 0.0
    %v415 = vmax.f32 %v383, 0.0
    %v416 = vmax.f32 %v384, 0.0
    %v417 = vmax.f32 %v385, 0.0
    %v418 = vmax.f32 %v386, 0.0
    %v419 = vmax.f32 %v387, 0.0
    %v420 = vmax.f32 %v388, 0.0
    %v421 = vmax.f32 %v389, 0.0
    %v422 = vmax.f32 %v390, 0.0
    %v423 = vmax.f32 %v391, 0.0
    %v424 = vmax.f32 %v392, 0.0
    %v425 = vmax.f32 %v393, 0.0
    %v426 = vmax.f32 %v394, 0.0
    %v427 = vmax.f32 %v395, 0.0
    %v428 = vmax.f32 %v396, 0.0
    %v429 = vmax.f32 %v397, 0.0
    %v430 = vmax.f32 %v398, 0.0
    %v431 = vmax.f32 %v399, 0.0
    %v432 = vmax.f32 %v400, 0.0
    %v433 = vmax.f32 %v401, 0.0
    %v434 = vmax.f32 %v402, 0.0
    %v435 = vmax.f32 %v403, 0.0
    %v436 = vmax.f32 %v404, 0.0
    %v437 = vmax.f32 %v405, 0.0
    %v438 = vmax.f32 %v406, 0.0
    %v439 = vmax.f32 %v407, 0.0
    %v440 = vmax.f32 %v408, 0.0
    %v441 = vmax.f32 %v409, 0.0
    %v442 = vld [vmem:[%s2] sm:$0xff]
    %v443 = vld [vmem:[%s2 + $0x8] sm:$0xff]
    %444 = vmatprep.subr.mxu0 0.0
    %v445 = vand.u32 %v425, 4294901760
    %446 = vmatpush1.msra.mxu0 %v445
    %447 = vmatprep.subr.mxu0 0.0
    %v448 = vand.u32 %v424, 4294901760
    %449 = vmatpush1.msra.mxu0 %v448
    %450 = vmatprep.subr.mxu0 0.0
    %v451 = vand.u32 %v423, 4294901760
    %452 = vmatpush1.msra.mxu0 %v451
    %453 = vmatprep.subr.mxu0 0.0
    %v454 = vand.u32 %v422, 4294901760
    %455 = vmatpush1.msra.mxu0 %v454
    %456 = vmatprep.subr.mxu0 0.0
    %v457 = vand.u32 %v421, 4294901760
    %458 = vmatpush1.msra.mxu0 %v457
    %459 = vmatprep.subr.mxu0 0.0
    %v460 = vand.u32 %v420, 4294901760
    %461 = vmatpush1.msra.mxu0 %v460
    %462 = vmatprep.subr.mxu0 0.0
    %v463 = vand.u32 %v419, 4294901760
    %464 = vmatpush1.msra.mxu0 %v463
    %465 = vmatprep.subr.mxu0 0.0
    %v466 = vand.u32 %v418, 4294901760
    %467 = vmatpush1.msra.mxu0 %v466
    %468 = vmatprep.subr.mxu0 0.0
    %v469 = vand.u32 %v417, 4294901760
    %470 = vmatpush1.msra.mxu0 %v469
    %471 = vmatprep.subr.mxu0 0.0
    %v472 = vand.u32 %v416, 4294901760
    %473 = vmatpush1.msra.mxu0 %v472
    %474 = vmatprep.subr.mxu0 0.0
    %v475 = vand.u32 %v415, 4294901760
    %476 = vmatpush1.msra.mxu0 %v475
    %477 = vmatprep.subr.mxu0 0.0
    %v478 = vand.u32 %v414, 4294901760
    %479 = vmatpush1.msra.mxu0 %v478
    %480 = vmatprep.subr.mxu0 0.0
    %v481 = vand.u32 %v413, 4294901760
    %482 = vmatpush1.msra.mxu0 %v481
    %483 = vmatprep.subr.mxu0 0.0
    %v484 = vand.u32 %v412, 4294901760
    %485 = vmatpush1.msra.mxu0 %v484
    %486 = vmatprep.subr.mxu0 0.0
    %v487 = vand.u32 %v411, 4294901760
    %488 = vmatpush1.msra.mxu0 %v487
    %489 = vmatprep.subr.mxu0 0.0
    %v490 = vand.u32 %v410, 4294901760
    %491 = vmatpush1.msra.mxu0 %v490
    %492 = vmatprep.subr.mxu0 0.0
    %v493 = vand.u32 %v441, 4294901760
    %494 = vmatpush2.msra.mxu0 %v493
    %495 = vmatprep.subr.mxu0 0.0
    %v496 = vand.u32 %v440, 4294901760
    %497 = vmatpush2.msra.mxu0 %v496
    %498 = vmatprep.subr.mxu0 0.0
    %v499 = vand.u32 %v439, 4294901760
    %500 = vmatpush2.msra.mxu0 %v499
    %501 = vmatprep.subr.mxu0 0.0
    %v502 = vand.u32 %v438, 4294901760
    %503 = vmatpush2.msra.mxu0 %v502
    %504 = vmatprep.subr.mxu0 0.0
    %v505 = vand.u32 %v437, 4294901760
    %506 = vmatpush2.msra.mxu0 %v505
    %507 = vmatprep.subr.mxu0 0.0
    %v508 = vand.u32 %v436, 4294901760
    %509 = vmatpush2.msra.mxu0 %v508
    %510 = vmatprep.subr.mxu0 0.0
    %v511 = vand.u32 %v435, 4294901760
    %512 = vmatpush2.msra.mxu0 %v511
    %513 = vmatprep.subr.mxu0 0.0
    %v514 = vand.u32 %v434, 4294901760
    %515 = vmatpush2.msra.mxu0 %v514
    %516 = vmatprep.subr.mxu0 0.0
    %v517 = vand.u32 %v433, 4294901760
    %518 = vmatpush2.msra.mxu0 %v517
    %519 = vmatprep.subr.mxu0 0.0
    %v520 = vand.u32 %v432, 4294901760
    %521 = vmatpush2.msra.mxu0 %v520
    %522 = vmatprep.subr.mxu0 0.0
    %v523 = vand.u32 %v431, 4294901760
    %524 = vmatpush2.msra.mxu0 %v523
    %525 = vmatprep.subr.mxu0 0.0
    %v526 = vand.u32 %v430, 4294901760
    %527 = vmatpush2.msra.mxu0 %v526
    %528 = vmatprep.subr.mxu0 0.0
    %v529 = vand.u32 %v429, 4294901760
    %530 = vmatpush2.msra.mxu0 %v529
    %531 = vmatprep.subr.mxu0 0.0
    %v532 = vand.u32 %v428, 4294901760
    %533 = vmatpush2.msra.mxu0 %v532
    %534 = vmatprep.subr.mxu0 0.0
    %v535 = vand.u32 %v427, 4294901760
    %536 = vmatpush2.msra.mxu0 %v535
    %537 = vmatprep.subr.mxu0 0.0
    %v538 = vand.u32 %v426, 4294901760
    %539 = vmatpush2.msra.mxu0 %v538
    %v540 = vand.u32 %v443, 4294901760
    %v541 = vsub.f32 %v443, %v540
    %v542 = vand.u32 %v541, 4294901760
    %v543 = vsub.f32 %v541, %v542
    %v544 = vand.u32 %v543, 4294901760
    %545 = vmatprep.mubr.f32.mxu0 %v544
    %v546 = vand.u32 %v442, 4294901760
    %v547 = vsub.f32 %v442, %v546
    %v548 = vand.u32 %v547, 4294901760
    %v549 = vsub.f32 %v547, %v548
    %v550 = vand.u32 %v549, 4294901760
    %551 = vmatmul.mubr.f32.gmra.mxu0 %v550
    %v552 = vpop.f32.mrf.mxu0
    %v553 = vadd.f32 0.0, %v552
    %v554 = vpop.f32.mrf.mxu0
    %555 = vdwg.mxu0
    %556 = vmatprep.subr.mxu0 0.0
    %v557 = vand.u32 %v425, 4294901760
    %v558 = vsub.f32 %v425, %v557
    %v559 = vand.u32 %v558, 4294901760
    %v560 = vsub.f32 %v558, %v559
    %v561 = vand.u32 %v560, 4294901760
    %562 = vmatpush1.msra.mxu0 %v561
    %563 = vmatprep.subr.mxu0 0.0
    %v564 = vand.u32 %v424, 4294901760
    %v565 = vsub.f32 %v424, %v564
    %v566 = vand.u32 %v565, 4294901760
    %v567 = vsub.f32 %v565, %v566
    %v568 = vand.u32 %v567, 4294901760
    %569 = vmatpush1.msra.mxu0 %v568
    %570 = vmatprep.subr.mxu0 0.0
    %v571 = vand.u32 %v423, 4294901760
    %v572 = vsub.f32 %v423, %v571
    %v573 = vand.u32 %v572, 4294901760
    %v574 = vsub.f32 %v572, %v573
    %v575 = vand.u32 %v574, 4294901760
    %576 = vmatpush1.msra.mxu0 %v575
    %577 = vmatprep.subr.mxu0 0.0
    %v578 = vand.u32 %v422, 4294901760
    %v579 = vsub.f32 %v422, %v578
    %v580 = vand.u32 %v579, 4294901760
    %v581 = vsub.f32 %v579, %v580
    %v582 = vand.u32 %v581, 4294901760
    %583 = vmatpush1.msra.mxu0 %v582
    %584 = vmatprep.subr.mxu0 0.0
    %v585 = vand.u32 %v421, 4294901760
    %v586 = vsub.f32 %v421, %v585
    %v587 = vand.u32 %v586, 4294901760
    %v588 = vsub.f32 %v586, %v587
    %v589 = vand.u32 %v588, 4294901760
    %590 = vmatpush1.msra.mxu0 %v589
    %591 = vmatprep.subr.mxu0 0.0
    %v592 = vand.u32 %v420, 4294901760
    %v593 = vsub.f32 %v420, %v592
    %v594 = vand.u32 %v593, 4294901760
    %v595 = vsub.f32 %v593, %v594
    %v596 = vand.u32 %v595, 4294901760
    %597 = vmatpush1.msra.mxu0 %v596
    %598 = vmatprep.subr.mxu0 0.0
    %v599 = vand.u32 %v419, 4294901760
    %v600 = vsub.f32 %v419, %v599
    %v601 = vand.u32 %v600, 4294901760
    %v602 = vsub.f32 %v600, %v601
    %v603 = vand.u32 %v602, 4294901760
    %604 = vmatpush1.msra.mxu0 %v603
    %605 = vmatprep.subr.mxu0 0.0
    %v606 = vand.u32 %v418, 4294901760
    %v607 = vsub.f32 %v418, %v606
    %v608 = vand.u32 %v607, 4294901760
    %v609 = vsub.f32 %v607, %v608
    %v610 = vand.u32 %v609, 4294901760
    %611 = vmatpush1.msra.mxu0 %v610
    %612 = vmatprep.subr.mxu0 0.0
    %v613 = vand.u32 %v417, 4294901760
    %v614 = vsub.f32 %v417, %v613
    %v615 = vand.u32 %v614, 4294901760
    %v616 = vsub.f32 %v614, %v615
    %v617 = vand.u32 %v616, 4294901760
    %618 = vmatpush1.msra.mxu0 %v617
    %619 = vmatprep.subr.mxu0 0.0
    %v620 = vand.u32 %v416, 4294901760
    %v621 = vsub.f32 %v416, %v620
    %v622 = vand.u32 %v621, 4294901760
    %v623 = vsub.f32 %v621, %v622
    %v624 = vand.u32 %v623, 4294901760
    %625 = vmatpush1.msra.mxu0 %v624
    %626 = vmatprep.subr.mxu0 0.0
    %v627 = vand.u32 %v415, 4294901760
    %v628 = vsub.f32 %v415, %v627
    %v629 = vand.u32 %v628, 4294901760
    %v630 = vsub.f32 %v628, %v629
    %v631 = vand.u32 %v630, 4294901760
    %632 = vmatpush1.msra.mxu0 %v631
    %633 = vmatprep.subr.mxu0 0.0
    %v634 = vand.u32 %v414, 4294901760
    %v635 = vsub.f32 %v414, %v634
    %v636 = vand.u32 %v635, 4294901760
    %v637 = vsub.f32 %v635, %v636
    %v638 = vand.u32 %v637, 4294901760
    %639 = vmatpush1.msra.mxu0 %v638
    %640 = vmatprep.subr.mxu0 0.0
    %v641 = vand.u32 %v413, 4294901760
    %v642 = vsub.f32 %v413, %v641
    %v643 = vand.u32 %v642, 4294901760
    %v644 = vsub.f32 %v642, %v643
    %v645 = vand.u32 %v644, 4294901760
    %646 = vmatpush1.msra.mxu0 %v645
    %647 = vmatprep.subr.mxu0 0.0
    %v648 = vand.u32 %v412, 4294901760
    %v649 = vsub.f32 %v412, %v648
    %v650 = vand.u32 %v649, 4294901760
    %v651 = vsub.f32 %v649, %v650
    %v652 = vand.u32 %v651, 4294901760
    %653 = vmatpush1.msra.mxu0 %v652
    %654 = vmatprep.subr.mxu0 0.0
    %v655 = vand.u32 %v411, 4294901760
    %v656 = vsub.f32 %v411, %v655
    %v657 = vand.u32 %v656, 4294901760
    %v658 = vsub.f32 %v656, %v657
    %v659 = vand.u32 %v658, 4294901760
    %660 = vmatpush1.msra.mxu0 %v659
    %661 = vmatprep.subr.mxu0 0.0
    %v662 = vand.u32 %v410, 4294901760
    %v663 = vsub.f32 %v410, %v662
    %v664 = vand.u32 %v663, 4294901760
    %v665 = vsub.f32 %v663, %v664
    %v666 = vand.u32 %v665, 4294901760
    %667 = vmatpush1.msra.mxu0 %v666
    %668 = vmatprep.subr.mxu0 0.0
    %v669 = vand.u32 %v441, 4294901760
    %v670 = vsub.f32 %v441, %v669
    %v671 = vand.u32 %v670, 4294901760
    %v672 = vsub.f32 %v670, %v671
    %v673 = vand.u32 %v672, 4294901760
    %674 = vmatpush2.msra.mxu0 %v673
    %675 = vmatprep.subr.mxu0 0.0
    %v676 = vand.u32 %v440, 4294901760
    %v677 = vsub.f32 %v440, %v676
    %v678 = vand.u32 %v677, 4294901760
    %v679 = vsub.f32 %v677, %v678
    %v680 = vand.u32 %v679, 4294901760
    %681 = vmatpush2.msra.mxu0 %v680
    %682 = vmatprep.subr.mxu0 0.0
    %v683 = vand.u32 %v439, 4294901760
    %v684 = vsub.f32 %v439, %v683
    %v685 = vand.u32 %v684, 4294901760
    %v686 = vsub.f32 %v684, %v685
    %v687 = vand.u32 %v686, 4294901760
    %688 = vmatpush2.msra.mxu0 %v687
    %689 = vmatprep.subr.mxu0 0.0
    %v690 = vand.u32 %v438, 4294901760
    %v691 = vsub.f32 %v438, %v690
    %v692 = vand.u32 %v691, 4294901760
    %v693 = vsub.f32 %v691, %v692
    %v694 = vand.u32 %v693, 4294901760
    %695 = vmatpush2.msra.mxu0 %v694
    %696 = vmatprep.subr.mxu0 0.0
    %v697 = vand.u32 %v437, 4294901760
    %v698 = vsub.f32 %v437, %v697
    %v699 = vand.u32 %v698, 4294901760
    %v700 = vsub.f32 %v698, %v699
    %v701 = vand.u32 %v700, 4294901760
    %702 = vmatpush2.msra.mxu0 %v701
    %703 = vmatprep.subr.mxu0 0.0
    %v704 = vand.u32 %v436, 4294901760
    %v705 = vsub.f32 %v436, %v704
    %v706 = vand.u32 %v705, 4294901760
    %v707 = vsub.f32 %v705, %v706
    %v708 = vand.u32 %v707, 4294901760
    %709 = vmatpush2.msra.mxu0 %v708
    %710 = vmatprep.subr.mxu0 0.0
    %v711 = vand.u32 %v435, 4294901760
    %v712 = vsub.f32 %v435, %v711
    %v713 = vand.u32 %v712, 4294901760
    %v714 = vsub.f32 %v712, %v713
    %v715 = vand.u32 %v714, 4294901760
    %716 = vmatpush2.msra.mxu0 %v715
    %717 = vmatprep.subr.mxu0 0.0
    %v718 = vand.u32 %v434, 4294901760
    %v719 = vsub.f32 %v434, %v718
    %v720 = vand.u32 %v719, 4294901760
    %v721 = vsub.f32 %v719, %v720
    %v722 = vand.u32 %v721, 4294901760
    %723 = vmatpush2.msra.mxu0 %v722
    %724 = vmatprep.subr.mxu0 0.0
    %v725 = vand.u32 %v433, 4294901760
    %v726 = vsub.f32 %v433, %v725
    %v727 = vand.u32 %v726, 4294901760
    %v728 = vsub.f32 %v726, %v727
    %v729 = vand.u32 %v728, 4294901760
    %730 = vmatpush2.msra.mxu0 %v729
    %731 = vmatprep.subr.mxu0 0.0
    %v732 = vand.u32 %v432, 4294901760
    %v733 = vsub.f32 %v432, %v732
    %v734 = vand.u32 %v733, 4294901760
    %v735 = vsub.f32 %v733, %v734
    %v736 = vand.u32 %v735, 4294901760
    %737 = vmatpush2.msra.mxu0 %v736
    %738 = vmatprep.subr.mxu0 0.0
    %v739 = vand.u32 %v431, 4294901760
    %v740 = vsub.f32 %v431, %v739
    %v741 = vand.u32 %v740, 4294901760
    %v742 = vsub.f32 %v740, %v741
    %v743 = vand.u32 %v742, 4294901760
    %744 = vmatpush2.msra.mxu0 %v743
    %745 = vmatprep.subr.mxu0 0.0
    %v746 = vand.u32 %v430, 4294901760
    %v747 = vsub.f32 %v430, %v746
    %v748 = vand.u32 %v747, 4294901760
    %v749 = vsub.f32 %v747, %v748
    %v750 = vand.u32 %v749, 4294901760
    %751 = vmatpush2.msra.mxu0 %v750
    %752 = vmatprep.subr.mxu0 0.0
    %v753 = vand.u32 %v429, 4294901760
    %v754 = vsub.f32 %v429, %v753
    %v755 = vand.u32 %v754, 4294901760
    %v756 = vsub.f32 %v754, %v755
    %v757 = vand.u32 %v756, 4294901760
    %758 = vmatpush2.msra.mxu0 %v757
    %759 = vmatprep.subr.mxu0 0.0
    %v760 = vand.u32 %v428, 4294901760
    %v761 = vsub.f32 %v428, %v760
    %v762 = vand.u32 %v761, 4294901760
    %v763 = vsub.f32 %v761, %v762
    %v764 = vand.u32 %v763, 4294901760
    %765 = vmatpush2.msra.mxu0 %v764
    %766 = vmatprep.subr.mxu0 0.0
    %v767 = vand.u32 %v427, 4294901760
    %v768 = vsub.f32 %v427, %v767
    %v769 = vand.u32 %v768, 4294901760
    %v770 = vsub.f32 %v768, %v769
    %v771 = vand.u32 %v770, 4294901760
    %772 = vmatpush2.msra.mxu0 %v771
    %773 = vmatprep.subr.mxu0 0.0
    %v774 = vand.u32 %v426, 4294901760
    %v775 = vsub.f32 %v426, %v774
    %v776 = vand.u32 %v775, 4294901760
    %v777 = vsub.f32 %v775, %v776
    %v778 = vand.u32 %v777, 4294901760
    %779 = vmatpush2.msra.mxu0 %v778
    %v780 = vand.u32 %v443, 4294901760
    %781 = vmatprep.mubr.f32.mxu0 %v780
    %v782 = vand.u32 %v442, 4294901760
    %783 = vmatmul.mubr.f32.gmra.mxu0 %v782
    %v784 = vpop.f32.mrf.mxu0
    %v785 = vadd.f32 %v553, %v784
    %v786 = vpop.f32.mrf.mxu0
    %787 = vdwg.mxu0
    %788 = vmatprep.subr.mxu0 0.0
    %v789 = vand.u32 %v425, 4294901760
    %v790 = vsub.f32 %v425, %v789
    %791 = vmatpush1.msra.mxu0 %v790
    %792 = vmatprep.subr.mxu0 0.0
    %v793 = vand.u32 %v424, 4294901760
    %v794 = vsub.f32 %v424, %v793
    %795 = vmatpush1.msra.mxu0 %v794
    %796 = vmatprep.subr.mxu0 0.0
    %v797 = vand.u32 %v423, 4294901760
    %v798 = vsub.f32 %v423, %v797
    %799 = vmatpush1.msra.mxu0 %v798
    %800 = vmatprep.subr.mxu0 0.0
    %v801 = vand.u32 %v422, 4294901760
    %v802 = vsub.f32 %v422, %v801
    %803 = vmatpush1.msra.mxu0 %v802
    %804 = vmatprep.subr.mxu0 0.0
    %v805 = vand.u32 %v421, 4294901760
    %v806 = vsub.f32 %v421, %v805
    %807 = vmatpush1.msra.mxu0 %v806
    %808 = vmatprep.subr.mxu0 0.0
    %v809 = vand.u32 %v420, 4294901760
    %v810 = vsub.f32 %v420, %v809
    %811 = vmatpush1.msra.mxu0 %v810
    %812 = vmatprep.subr.mxu0 0.0
    %v813 = vand.u32 %v419, 4294901760
    %v814 = vsub.f32 %v419, %v813
    %815 = vmatpush1.msra.mxu0 %v814
    %816 = vmatprep.subr.mxu0 0.0
    %v817 = vand.u32 %v418, 4294901760
    %v818 = vsub.f32 %v418, %v817
    %819 = vmatpush1.msra.mxu0 %v818
    %820 = vmatprep.subr.mxu0 0.0
    %v821 = vand.u32 %v417, 4294901760
    %v822 = vsub.f32 %v417, %v821
    %823 = vmatpush1.msra.mxu0 %v822
    %824 = vmatprep.subr.mxu0 0.0
    %v825 = vand.u32 %v416, 4294901760
    %v826 = vsub.f32 %v416, %v825
    %827 = vmatpush1.msra.mxu0 %v826
    %828 = vmatprep.subr.mxu0 0.0
    %v829 = vand.u32 %v415, 4294901760
    %v830 = vsub.f32 %v415, %v829
    %831 = vmatpush1.msra.mxu0 %v830
    %832 = vmatprep.subr.mxu0 0.0
    %v833 = vand.u32 %v414, 4294901760
    %v834 = vsub.f32 %v414, %v833
    %835 = vmatpush1.msra.mxu0 %v834
    %836 = vmatprep.subr.mxu0 0.0
    %v837 = vand.u32 %v413, 4294901760
    %v838 = vsub.f32 %v413, %v837
    %839 = vmatpush1.msra.mxu0 %v838
    %840 = vmatprep.subr.mxu0 0.0
    %v841 = vand.u32 %v412, 4294901760
    %v842 = vsub.f32 %v412, %v841
    %843 = vmatpush1.msra.mxu0 %v842
    %844 = vmatprep.subr.mxu0 0.0
    %v845 = vand.u32 %v411, 4294901760
    %v846 = vsub.f32 %v411, %v845
    %847 = vmatpush1.msra.mxu0 %v846
    %848 = vmatprep.subr.mxu0 0.0
    %v849 = vand.u32 %v410, 4294901760
    %v850 = vsub.f32 %v410, %v849
    %851 = vmatpush1.msra.mxu0 %v850
    %852 = vmatprep.subr.mxu0 0.0
    %v853 = vand.u32 %v441, 4294901760
    %v854 = vsub.f32 %v441, %v853
    %855 = vmatpush2.msra.mxu0 %v854
    %856 = vmatprep.subr.mxu0 0.0
    %v857 = vand.u32 %v440, 4294901760
    %v858 = vsub.f32 %v440, %v857
    %859 = vmatpush2.msra.mxu0 %v858
    %860 = vmatprep.subr.mxu0 0.0
    %v861 = vand.u32 %v439, 4294901760
    %v862 = vsub.f32 %v439, %v861
    %863 = vmatpush2.msra.mxu0 %v862
    %864 = vmatprep.subr.mxu0 0.0
    %v865 = vand.u32 %v438, 4294901760
    %v866 = vsub.f32 %v438, %v865
    %867 = vmatpush2.msra.mxu0 %v866
    %868 = vmatprep.subr.mxu0 0.0
    %v869 = vand.u32 %v437, 4294901760
    %v870 = vsub.f32 %v437, %v869
    %871 = vmatpush2.msra.mxu0 %v870
    %872 = vmatprep.subr.mxu0 0.0
    %v873 = vand.u32 %v436, 4294901760
    %v874 = vsub.f32 %v436, %v873
    %875 = vmatpush2.msra.mxu0 %v874
    %876 = vmatprep.subr.mxu0 0.0
    %v877 = vand.u32 %v435, 4294901760
    %v878 = vsub.f32 %v435, %v877
    %879 = vmatpush2.msra.mxu0 %v878
    %880 = vmatprep.subr.mxu0 0.0
    %v881 = vand.u32 %v434, 4294901760
    %v882 = vsub.f32 %v434, %v881
    %883 = vmatpush2.msra.mxu0 %v882
    %884 = vmatprep.subr.mxu0 0.0
    %v885 = vand.u32 %v433, 4294901760
    %v886 = vsub.f32 %v433, %v885
    %887 = vmatpush2.msra.mxu0 %v886
    %888 = vmatprep.subr.mxu0 0.0
    %v889 = vand.u32 %v432, 4294901760
    %v890 = vsub.f32 %v432, %v889
    %891 = vmatpush2.msra.mxu0 %v890
    %892 = vmatprep.subr.mxu0 0.0
    %v893 = vand.u32 %v431, 4294901760
    %v894 = vsub.f32 %v431, %v893
    %895 = vmatpush2.msra.mxu0 %v894
    %896 = vmatprep.subr.mxu0 0.0
    %v897 = vand.u32 %v430, 4294901760
    %v898 = vsub.f32 %v430, %v897
    %899 = vmatpush2.msra.mxu0 %v898
    %900 = vmatprep.subr.mxu0 0.0
    %v901 = vand.u32 %v429, 4294901760
    %v902 = vsub.f32 %v429, %v901
    %903 = vmatpush2.msra.mxu0 %v902
    %904 = vmatprep.subr.mxu0 0.0
    %v905 = vand.u32 %v428, 4294901760
    %v906 = vsub.f32 %v428, %v905
    %907 = vmatpush2.msra.mxu0 %v906
    %908 = vmatprep.subr.mxu0 0.0
    %v909 = vand.u32 %v427, 4294901760
    %v910 = vsub.f32 %v427, %v909
    %911 = vmatpush2.msra.mxu0 %v910
    %912 = vmatprep.subr.mxu0 0.0
    %v913 = vand.u32 %v426, 4294901760
    %v914 = vsub.f32 %v426, %v913
    %915 = vmatpush2.msra.mxu0 %v914
    %v916 = vand.u32 %v443, 4294901760
    %v917 = vsub.f32 %v443, %v916
    %918 = vmatprep.mubr.f32.mxu0 %v917
    %v919 = vand.u32 %v442, 4294901760
    %v920 = vsub.f32 %v442, %v919
    %921 = vmatmul.mubr.f32.gmra.mxu0 %v920
    %v922 = vpop.f32.mrf.mxu0
    %v923 = vadd.f32 %v785, %v922
    %v924 = vpop.f32.mrf.mxu0
    %925 = vdwg.mxu0
    %926 = vmatprep.subr.mxu0 0.0
    %v927 = vand.u32 %v425, 4294901760
    %928 = vmatpush1.msra.mxu0 %v927
    %929 = vmatprep.subr.mxu0 0.0
    %v930 = vand.u32 %v424, 4294901760
    %931 = vmatpush1.msra.mxu0 %v930
    %932 = vmatprep.subr.mxu0 0.0
    %v933 = vand.u32 %v423, 4294901760
    %934 = vmatpush1.msra.mxu0 %v933
    %935 = vmatprep.subr.mxu0 0.0
    %v936 = vand.u32 %v422, 4294901760
    %937 = vmatpush1.msra.mxu0 %v936
    %938 = vmatprep.subr.mxu0 0.0
    %v939 = vand.u32 %v421, 4294901760
    %940 = vmatpush1.msra.mxu0 %v939
    %941 = vmatprep.subr.mxu0 0.0
    %v942 = vand.u32 %v420, 4294901760
    %943 = vmatpush1.msra.mxu0 %v942
    %944 = vmatprep.subr.mxu0 0.0
    %v945 = vand.u32 %v419, 4294901760
    %946 = vmatpush1.msra.mxu0 %v945
    %947 = vmatprep.subr.mxu0 0.0
    %v948 = vand.u32 %v418, 4294901760
    %949 = vmatpush1.msra.mxu0 %v948
    %950 = vmatprep.subr.mxu0 0.0
    %v951 = vand.u32 %v417, 4294901760
    %952 = vmatpush1.msra.mxu0 %v951
    %953 = vmatprep.subr.mxu0 0.0
    %v954 = vand.u32 %v416, 4294901760
    %955 = vmatpush1.msra.mxu0 %v954
    %956 = vmatprep.subr.mxu0 0.0
    %v957 = vand.u32 %v415, 4294901760
    %958 = vmatpush1.msra.mxu0 %v957
    %959 = vmatprep.subr.mxu0 0.0
    %v960 = vand.u32 %v414, 4294901760
    %961 = vmatpush1.msra.mxu0 %v960
    %962 = vmatprep.subr.mxu0 0.0
    %v963 = vand.u32 %v413, 4294901760
    %964 = vmatpush1.msra.mxu0 %v963
    %965 = vmatprep.subr.mxu0 0.0
    %v966 = vand.u32 %v412, 4294901760
    %967 = vmatpush1.msra.mxu0 %v966
    %968 = vmatprep.subr.mxu0 0.0
    %v969 = vand.u32 %v411, 4294901760
    %970 = vmatpush1.msra.mxu0 %v969
    %971 = vmatprep.subr.mxu0 0.0
    %v972 = vand.u32 %v410, 4294901760
    %973 = vmatpush1.msra.mxu0 %v972
    %974 = vmatprep.subr.mxu0 0.0
    %v975 = vand.u32 %v441, 4294901760
    %976 = vmatpush2.msra.mxu0 %v975
    %977 = vmatprep.subr.mxu0 0.0
    %v978 = vand.u32 %v440, 4294901760
    %979 = vmatpush2.msra.mxu0 %v978
    %980 = vmatprep.subr.mxu0 0.0
    %v981 = vand.u32 %v439, 4294901760
    %982 = vmatpush2.msra.mxu0 %v981
    %983 = vmatprep.subr.mxu0 0.0
    %v984 = vand.u32 %v438, 4294901760
    %985 = vmatpush2.msra.mxu0 %v984
    %986 = vmatprep.subr.mxu0 0.0
    %v987 = vand.u32 %v437, 4294901760
    %988 = vmatpush2.msra.mxu0 %v987
    %989 = vmatprep.subr.mxu0 0.0
    %v990 = vand.u32 %v436, 4294901760
    %991 = vmatpush2.msra.mxu0 %v990
    %992 = vmatprep.subr.mxu0 0.0
    %v993 = vand.u32 %v435, 4294901760
    %994 = vmatpush2.msra.mxu0 %v993
    %995 = vmatprep.subr.mxu0 0.0
    %v996 = vand.u32 %v434, 4294901760
    %997 = vmatpush2.msra.mxu0 %v996
    %998 = vmatprep.subr.mxu0 0.0
    %v999 = vand.u32 %v433, 4294901760
    %1000 = vmatpush2.msra.mxu0 %v999
    %1001 = vmatprep.subr.mxu0 0.0
    %v1002 = vand.u32 %v432, 4294901760
    %1003 = vmatpush2.msra.mxu0 %v1002
    %1004 = vmatprep.subr.mxu0 0.0
    %v1005 = vand.u32 %v431, 4294901760
    %1006 = vmatpush2.msra.mxu0 %v1005
    %1007 = vmatprep.subr.mxu0 0.0
    %v1008 = vand.u32 %v430, 4294901760
    %1009 = vmatpush2.msra.mxu0 %v1008
    %1010 = vmatprep.subr.mxu0 0.0
    %v1011 = vand.u32 %v429, 4294901760
    %1012 = vmatpush2.msra.mxu0 %v1011
    %1013 = vmatprep.subr.mxu0 0.0
    %v1014 = vand.u32 %v428, 4294901760
    %1015 = vmatpush2.msra.mxu0 %v1014
    %1016 = vmatprep.subr.mxu0 0.0
    %v1017 = vand.u32 %v427, 4294901760
    %1018 = vmatpush2.msra.mxu0 %v1017
    %1019 = vmatprep.subr.mxu0 0.0
    %v1020 = vand.u32 %v426, 4294901760
    %1021 = vmatpush2.msra.mxu0 %v1020
    %v1022 = vand.u32 %v443, 4294901760
    %v1023 = vsub.f32 %v443, %v1022
    %v1024 = vand.u32 %v1023, 4294901760
    %1025 = vmatprep.mubr.f32.mxu0 %v1024
    %v1026 = vand.u32 %v442, 4294901760
    %v1027 = vsub.f32 %v442, %v1026
    %v1028 = vand.u32 %v1027, 4294901760
    %1029 = vmatmul.mubr.f32.gmra.mxu0 %v1028
    %v1030 = vpop.f32.mrf.mxu0
    %v1031 = vadd.f32 %v923, %v1030
    %v1032 = vpop.f32.mrf.mxu0
    %1033 = vdwg.mxu0
    %1034 = vmatprep.subr.mxu0 0.0
    %v1035 = vand.u32 %v425, 4294901760
    %v1036 = vsub.f32 %v425, %v1035
    %v1037 = vand.u32 %v1036, 4294901760
    %1038 = vmatpush1.msra.mxu0 %v1037
    %1039 = vmatprep.subr.mxu0 0.0
    %v1040 = vand.u32 %v424, 4294901760
    %v1041 = vsub.f32 %v424, %v1040
    %v1042 = vand.u32 %v1041, 4294901760
    %1043 = vmatpush1.msra.mxu0 %v1042
    %1044 = vmatprep.subr.mxu0 0.0
    %v1045 = vand.u32 %v423, 4294901760
    %v1046 = vsub.f32 %v423, %v1045
    %v1047 = vand.u32 %v1046, 4294901760
    %1048 = vmatpush1.msra.mxu0 %v1047
    %1049 = vmatprep.subr.mxu0 0.0
    %v1050 = vand.u32 %v422, 4294901760
    %v1051 = vsub.f32 %v422, %v1050
    %v1052 = vand.u32 %v1051, 4294901760
    %1053 = vmatpush1.msra.mxu0 %v1052
    %1054 = vmatprep.subr.mxu0 0.0
    %v1055 = vand.u32 %v421, 4294901760
    %v1056 = vsub.f32 %v421, %v1055
    %v1057 = vand.u32 %v1056, 4294901760
    %1058 = vmatpush1.msra.mxu0 %v1057
    %1059 = vmatprep.subr.mxu0 0.0
    %v1060 = vand.u32 %v420, 4294901760
    %v1061 = vsub.f32 %v420, %v1060
    %v1062 = vand.u32 %v1061, 4294901760
    %1063 = vmatpush1.msra.mxu0 %v1062
    %1064 = vmatprep.subr.mxu0 0.0
    %v1065 = vand.u32 %v419, 4294901760
    %v1066 = vsub.f32 %v419, %v1065
    %v1067 = vand.u32 %v1066, 4294901760
    %1068 = vmatpush1.msra.mxu0 %v1067
    %1069 = vmatprep.subr.mxu0 0.0
    %v1070 = vand.u32 %v418, 4294901760
    %v1071 = vsub.f32 %v418, %v1070
    %v1072 = vand.u32 %v1071, 4294901760
    %1073 = vmatpush1.msra.mxu0 %v1072
    %1074 = vmatprep.subr.mxu0 0.0
    %v1075 = vand.u32 %v417, 4294901760
    %v1076 = vsub.f32 %v417, %v1075
    %v1077 = vand.u32 %v1076, 4294901760
    %1078 = vmatpush1.msra.mxu0 %v1077
    %1079 = vmatprep.subr.mxu0 0.0
    %v1080 = vand.u32 %v416, 4294901760
    %v1081 = vsub.f32 %v416, %v1080
    %v1082 = vand.u32 %v1081, 4294901760
    %1083 = vmatpush1.msra.mxu0 %v1082
    %1084 = vmatprep.subr.mxu0 0.0
    %v1085 = vand.u32 %v415, 4294901760
    %v1086 = vsub.f32 %v415, %v1085
    %v1087 = vand.u32 %v1086, 4294901760
    %1088 = vmatpush1.msra.mxu0 %v1087
    %1089 = vmatprep.subr.mxu0 0.0
    %v1090 = vand.u32 %v414, 4294901760
    %v1091 = vsub.f32 %v414, %v1090
    %v1092 = vand.u32 %v1091, 4294901760
    %1093 = vmatpush1.msra.mxu0 %v1092
    %1094 = vmatprep.subr.mxu0 0.0
    %v1095 = vand.u32 %v413, 4294901760
    %v1096 = vsub.f32 %v413, %v1095
    %v1097 = vand.u32 %v1096, 4294901760
    %1098 = vmatpush1.msra.mxu0 %v1097
    %1099 = vmatprep.subr.mxu0 0.0
    %v1100 = vand.u32 %v412, 4294901760
    %v1101 = vsub.f32 %v412, %v1100
    %v1102 = vand.u32 %v1101, 4294901760
    %1103 = vmatpush1.msra.mxu0 %v1102
    %1104 = vmatprep.subr.mxu0 0.0
    %v1105 = vand.u32 %v411, 4294901760
    %v1106 = vsub.f32 %v411, %v1105
    %v1107 = vand.u32 %v1106, 4294901760
    %1108 = vmatpush1.msra.mxu0 %v1107
    %1109 = vmatprep.subr.mxu0 0.0
    %v1110 = vand.u32 %v410, 4294901760
    %v1111 = vsub.f32 %v410, %v1110
    %v1112 = vand.u32 %v1111, 4294901760
    %1113 = vmatpush1.msra.mxu0 %v1112
    %1114 = vmatprep.subr.mxu0 0.0
    %v1115 = vand.u32 %v441, 4294901760
    %v1116 = vsub.f32 %v441, %v1115
    %v1117 = vand.u32 %v1116, 4294901760
    %1118 = vmatpush2.msra.mxu0 %v1117
    %1119 = vmatprep.subr.mxu0 0.0
    %v1120 = vand.u32 %v440, 4294901760
    %v1121 = vsub.f32 %v440, %v1120
    %v1122 = vand.u32 %v1121, 4294901760
    %1123 = vmatpush2.msra.mxu0 %v1122
    %1124 = vmatprep.subr.mxu0 0.0
    %v1125 = vand.u32 %v439, 4294901760
    %v1126 = vsub.f32 %v439, %v1125
    %v1127 = vand.u32 %v1126, 4294901760
    %1128 = vmatpush2.msra.mxu0 %v1127
    %1129 = vmatprep.subr.mxu0 0.0
    %v1130 = vand.u32 %v438, 4294901760
    %v1131 = vsub.f32 %v438, %v1130
    %v1132 = vand.u32 %v1131, 4294901760
    %1133 = vmatpush2.msra.mxu0 %v1132
    %1134 = vmatprep.subr.mxu0 0.0
    %v1135 = vand.u32 %v437, 4294901760
    %v1136 = vsub.f32 %v437, %v1135
    %v1137 = vand.u32 %v1136, 4294901760
    %1138 = vmatpush2.msra.mxu0 %v1137
    %1139 = vmatprep.subr.mxu0 0.0
    %v1140 = vand.u32 %v436, 4294901760
    %v1141 = vsub.f32 %v436, %v1140
    %v1142 = vand.u32 %v1141, 4294901760
    %1143 = vmatpush2.msra.mxu0 %v1142
    %1144 = vmatprep.subr.mxu0 0.0
    %v1145 = vand.u32 %v435, 4294901760
    %v1146 = vsub.f32 %v435, %v1145
    %v1147 = vand.u32 %v1146, 4294901760
    %1148 = vmatpush2.msra.mxu0 %v1147
    %1149 = vmatprep.subr.mxu0 0.0
    %v1150 = vand.u32 %v434, 4294901760
    %v1151 = vsub.f32 %v434, %v1150
    %v1152 = vand.u32 %v1151, 4294901760
    %1153 = vmatpush2.msra.mxu0 %v1152
    %1154 = vmatprep.subr.mxu0 0.0
    %v1155 = vand.u32 %v433, 4294901760
    %v1156 = vsub.f32 %v433, %v1155
    %v1157 = vand.u32 %v1156, 4294901760
    %1158 = vmatpush2.msra.mxu0 %v1157
    %1159 = vmatprep.subr.mxu0 0.0
    %v1160 = vand.u32 %v432, 4294901760
    %v1161 = vsub.f32 %v432, %v1160
    %v1162 = vand.u32 %v1161, 4294901760
    %1163 = vmatpush2.msra.mxu0 %v1162
    %1164 = vmatprep.subr.mxu0 0.0
    %v1165 = vand.u32 %v431, 4294901760
    %v1166 = vsub.f32 %v431, %v1165
    %v1167 = vand.u32 %v1166, 4294901760
    %1168 = vmatpush2.msra.mxu0 %v1167
    %1169 = vmatprep.subr.mxu0 0.0
    %v1170 = vand.u32 %v430, 4294901760
    %v1171 = vsub.f32 %v430, %v1170
    %v1172 = vand.u32 %v1171, 4294901760
    %1173 = vmatpush2.msra.mxu0 %v1172
    %1174 = vmatprep.subr.mxu0 0.0
    %v1175 = vand.u32 %v429, 4294901760
    %v1176 = vsub.f32 %v429, %v1175
    %v1177 = vand.u32 %v1176, 4294901760
    %1178 = vmatpush2.msra.mxu0 %v1177
    %1179 = vmatprep.subr.mxu0 0.0
    %v1180 = vand.u32 %v428, 4294901760
    %v1181 = vsub.f32 %v428, %v1180
    %v1182 = vand.u32 %v1181, 4294901760
    %1183 = vmatpush2.msra.mxu0 %v1182
    %1184 = vmatprep.subr.mxu0 0.0
    %v1185 = vand.u32 %v427, 4294901760
    %v1186 = vsub.f32 %v427, %v1185
    %v1187 = vand.u32 %v1186, 4294901760
    %1188 = vmatpush2.msra.mxu0 %v1187
    %1189 = vmatprep.subr.mxu0 0.0
    %v1190 = vand.u32 %v426, 4294901760
    %v1191 = vsub.f32 %v426, %v1190
    %v1192 = vand.u32 %v1191, 4294901760
    %1193 = vmatpush2.msra.mxu0 %v1192
    %v1194 = vand.u32 %v443, 4294901760
    %1195 = vmatprep.mubr.f32.mxu0 %v1194
    %v1196 = vand.u32 %v442, 4294901760
    %1197 = vmatmul.mubr.f32.gmra.mxu0 %v1196
    %v1198 = vpop.f32.mrf.mxu0
    %v1199 = vadd.f32 %v1031, %v1198
    %v1200 = vpop.f32.mrf.mxu0
    %1201 = vdwg.mxu0
    %1202 = vmatprep.subr.mxu0 0.0
    %v1203 = vand.u32 %v425, 4294901760
    %1204 = vmatpush1.msra.mxu0 %v1203
    %1205 = vmatprep.subr.mxu0 0.0
    %v1206 = vand.u32 %v424, 4294901760
    %1207 = vmatpush1.msra.mxu0 %v1206
    %1208 = vmatprep.subr.mxu0 0.0
    %v1209 = vand.u32 %v423, 4294901760
    %1210 = vmatpush1.msra.mxu0 %v1209
    %1211 = vmatprep.subr.mxu0 0.0
    %v1212 = vand.u32 %v422, 4294901760
    %1213 = vmatpush1.msra.mxu0 %v1212
    %1214 = vmatprep.subr.mxu0 0.0
    %v1215 = vand.u32 %v421, 4294901760
    %1216 = vmatpush1.msra.mxu0 %v1215
    %1217 = vmatprep.subr.mxu0 0.0
    %v1218 = vand.u32 %v420, 4294901760
    %1219 = vmatpush1.msra.mxu0 %v1218
    %1220 = vmatprep.subr.mxu0 0.0
    %v1221 = vand.u32 %v419, 4294901760
    %1222 = vmatpush1.msra.mxu0 %v1221
    %1223 = vmatprep.subr.mxu0 0.0
    %v1224 = vand.u32 %v418, 4294901760
    %1225 = vmatpush1.msra.mxu0 %v1224
    %1226 = vmatprep.subr.mxu0 0.0
    %v1227 = vand.u32 %v417, 4294901760
    %1228 = vmatpush1.msra.mxu0 %v1227
    %1229 = vmatprep.subr.mxu0 0.0
    %v1230 = vand.u32 %v416, 4294901760
    %1231 = vmatpush1.msra.mxu0 %v1230
    %1232 = vmatprep.subr.mxu0 0.0
    %v1233 = vand.u32 %v415, 4294901760
    %1234 = vmatpush1.msra.mxu0 %v1233
    %1235 = vmatprep.subr.mxu0 0.0
    %v1236 = vand.u32 %v414, 4294901760
    %1237 = vmatpush1.msra.mxu0 %v1236
    %1238 = vmatprep.subr.mxu0 0.0
    %v1239 = vand.u32 %v413, 4294901760
    %1240 = vmatpush1.msra.mxu0 %v1239
    %1241 = vmatprep.subr.mxu0 0.0
    %v1242 = vand.u32 %v412, 4294901760
    %1243 = vmatpush1.msra.mxu0 %v1242
    %1244 = vmatprep.subr.mxu0 0.0
    %v1245 = vand.u32 %v411, 4294901760
    %1246 = vmatpush1.msra.mxu0 %v1245
    %1247 = vmatprep.subr.mxu0 0.0
    %v1248 = vand.u32 %v410, 4294901760
    %1249 = vmatpush1.msra.mxu0 %v1248
    %1250 = vmatprep.subr.mxu0 0.0
    %v1251 = vand.u32 %v441, 4294901760
    %1252 = vmatpush2.msra.mxu0 %v1251
    %1253 = vmatprep.subr.mxu0 0.0
    %v1254 = vand.u32 %v440, 4294901760
    %1255 = vmatpush2.msra.mxu0 %v1254
    %1256 = vmatprep.subr.mxu0 0.0
    %v1257 = vand.u32 %v439, 4294901760
    %1258 = vmatpush2.msra.mxu0 %v1257
    %1259 = vmatprep.subr.mxu0 0.0
    %v1260 = vand.u32 %v438, 4294901760
    %1261 = vmatpush2.msra.mxu0 %v1260
    %1262 = vmatprep.subr.mxu0 0.0
    %v1263 = vand.u32 %v437, 4294901760
    %1264 = vmatpush2.msra.mxu0 %v1263
    %1265 = vmatprep.subr.mxu0 0.0
    %v1266 = vand.u32 %v436, 4294901760
    %1267 = vmatpush2.msra.mxu0 %v1266
    %1268 = vmatprep.subr.mxu0 0.0
    %v1269 = vand.u32 %v435, 4294901760
    %1270 = vmatpush2.msra.mxu0 %v1269
    %1271 = vmatprep.subr.mxu0 0.0
    %v1272 = vand.u32 %v434, 4294901760
    %1273 = vmatpush2.msra.mxu0 %v1272
    %1274 = vmatprep.subr.mxu0 0.0
    %v1275 = vand.u32 %v433, 4294901760
    %1276 = vmatpush2.msra.mxu0 %v1275
    %1277 = vmatprep.subr.mxu0 0.0
    %v1278 = vand.u32 %v432, 4294901760
    %1279 = vmatpush2.msra.mxu0 %v1278
    %1280 = vmatprep.subr.mxu0 0.0
    %v1281 = vand.u32 %v431, 4294901760
    %1282 = vmatpush2.msra.mxu0 %v1281
    %1283 = vmatprep.subr.mxu0 0.0
    %v1284 = vand.u32 %v430, 4294901760
    %1285 = vmatpush2.msra.mxu0 %v1284
    %1286 = vmatprep.subr.mxu0 0.0
    %v1287 = vand.u32 %v429, 4294901760
    %1288 = vmatpush2.msra.mxu0 %v1287
    %1289 = vmatprep.subr.mxu0 0.0
    %v1290 = vand.u32 %v428, 4294901760
    %1291 = vmatpush2.msra.mxu0 %v1290
    %1292 = vmatprep.subr.mxu0 0.0
    %v1293 = vand.u32 %v427, 4294901760
    %1294 = vmatpush2.msra.mxu0 %v1293
    %1295 = vmatprep.subr.mxu0 0.0
    %v1296 = vand.u32 %v426, 4294901760
    %1297 = vmatpush2.msra.mxu0 %v1296
    %v1298 = vand.u32 %v443, 4294901760
    %1299 = vmatprep.mubr.f32.mxu0 %v1298
    %v1300 = vand.u32 %v442, 4294901760
    %1301 = vmatmul.mubr.f32.gmra.mxu0 %v1300
    %v1302 = vpop.f32.mrf.mxu0
    %v1303 = vadd.f32 %v1199, %v1302
    %v1304 = vpop.f32.mrf.mxu0
    %1305 = vdwg.mxu0
    %s1306 = sld [smem:[#allocation2]]
    %v1307 = vstv %s1306
    %v1308 = vadd.f32 %v1303, %v1307
    %1309 = vst [vmem:[#allocation3] sm:$0x1] %v1308
    // Predicated region
    $region18: #{tpu_custom_call.1} parent=1 // pred_check
      _
    $region19: #{tpu_custom_call.1} parent=1 // pred_check_branch
      %1311 = sbr.rel (0) target = $region21
    $region20: #{tpu_custom_call.1} parent=1 // pred_region
      %s1313 = ssub.s32 16, 16
      %1314 = vsyncadd [#allocation4], %s1313
      %s1316 = sshll.u32 [#allocation3], 4
      %s1317 = int_to_ptr.vmem [resolvable:$true] %s1316
      %1319 = dma.vmem_to_hbm [thread:$0]  %s1317, 16, %s4, [#allocation4]
    $region21: #{tpu_custom_call.1} parent=1 // pred_fallthru
      _
    // Predicated region
    $region22: #{tpu_custom_call.1} parent=1 // pred_check
      _
    $region23: #{tpu_custom_call.1} parent=1 // pred_check_branch
      %1321 = sbr.rel (0) target = $region25
    $region24: #{tpu_custom_call.1} parent=1 // pred_region
      %1322 = dma.done [#allocation4], 16
    $region25: #{tpu_custom_call.1} parent=1 // pred_fallthru
      _
    %1323 = vsyncpa [#allocation4], 1

</llo_original>
